<compile_context>
chip_gen: v5e
topology: v5e:2x2
jax: 0.10.0
libtpu: 0.0.40
codegen_flags: <defaults>
</compile_context>

<pallas_src>
import functools

import jax
import jax.numpy as jnp
from jax.experimental import pallas as pl
from jax.experimental.pallas import tpu as pltpu


def _round_up(x, m):
    return ((x + m - 1) // m) * m


def _fwd_kernel(x_ref, w_ref, b_ref, logp_ref):
    """One batch tile: folded Linear (bf16 MXU, f32 acc) + LogSoftmax."""
    x = x_ref[...].astype(jnp.bfloat16)  # cast in-kernel, rides under the DMA
    logits = jnp.dot(x, w_ref[...],
                     preferred_element_type=jnp.float32) + b_ref[...]
    # Numerically stable log-softmax along the class dim (all f32).
    row_max = jnp.max(logits, axis=1, keepdims=True)
    z = logits - row_max
    lse = jnp.log(jnp.sum(jnp.exp(z), axis=1, keepdims=True))
    logp_ref[...] = z - lse


def prepare_params(w1t, b1, w2t, b2, w3t, b3):
    """Fold the activation-free Linear stack once, outside the forward path.

    Exact in f32 (Precision.HIGHEST); the folded weight is cast to bf16 once
    for the MXU, the folded bias stays f32 (added after the f32-accumulating
    dot inside the kernel).
    """
    hp = jax.lax.Precision.HIGHEST
    w_fold = jnp.dot(jnp.dot(w1t, w2t, precision=hp), w3t, precision=hp)
    b_fold = jnp.dot(jnp.dot(b1, w2t, precision=hp) + b2, w3t,
                     precision=hp) + b3
    return w_fold.astype(jnp.bfloat16), b_fold.astype(jnp.float32)


@functools.partial(jax.jit, static_argnames=("tile_batch",))
def hd_encoder_forward(x, w_fold, b_fold, *, tile_batch=None):
    batch, in_size = x.shape
    out_size = w_fold.shape[1]

    if tile_batch is None:
        # Large tiles amortize the ~0.35us/step fixed cost; keep >= 2 tiles
        # when the batch allows so v7x's two TensorCores both get work.
        tile_b = min(2048, _round_up(pl.cdiv(batch, 2), 8))
    else:
        tile_b = _round_up(tile_batch, 8)
    tile_b = max(tile_b, 8)
    num_tiles = pl.cdiv(batch, tile_b)

    logp = pl.pallas_call(
        _fwd_kernel,
        grid=(num_tiles,),
        in_specs=[
            pl.BlockSpec((tile_b, in_size), lambda i: (i, 0)),    # x tile
            pl.BlockSpec((in_size, out_size), lambda i: (0, 0)),  # folded W
            pl.BlockSpec((1, out_size), lambda i: (0, 0)),        # folded b
        ],
        out_specs=pl.BlockSpec((tile_b, out_size), lambda i: (i, 0)),
        out_shape=jax.ShapeDtypeStruct((batch, out_size), jnp.float32),
        compiler_params=pltpu.CompilerParams(
            dimension_semantics=("parallel",)),
    )(x, w_fold, b_fold)

    # binarize_outputs: global max over the whole logp tensor + threshold.
    # Trivial elementwise op over (batch, out_size); plain XLA fuses it.
    bin_x = (logp > (jnp.max(logp) - jnp.float32(0.1))).astype(jnp.int32)
    return logp, bin_x


def init_params(key, input_size, hidden_size, output_size):
    """Deterministic synthetic parameters (nn.Linear shapes, pre-transposed)."""
    k1, k2, k3, k4, k5, k6 = jax.random.split(key, 6)
    scale = 0.1
    w1t = scale * jax.random.normal(k1, (input_size, hidden_size), jnp.float32)
    b1 = scale * jax.random.normal(k2, (1, hidden_size), jnp.float32)
    w2t = scale * jax.random.normal(k3, (hidden_size, hidden_size), jnp.float32)
    b2 = scale * jax.random.normal(k4, (1, hidden_size), jnp.float32)
    w3t = scale * jax.random.normal(k5, (hidden_size, output_size), jnp.float32)
    b3 = scale * jax.random.normal(k6, (1, output_size), jnp.float32)
    return w1t, b1, w2t, b2, w3t, b3


def reference_forward(x, w1t, b1, w2t, b2, w3t, b3):
    """Pure-f32 reference mirroring the PyTorch module."""
    hp = jax.lax.Precision.HIGHEST
    h = jnp.dot(x, w1t, precision=hp) + b1
    h = jnp.dot(h, w2t, precision=hp) + b2
    logits = jnp.dot(h, w3t, precision=hp) + b3
    logp = jax.nn.log_softmax(logits, axis=1)
    bin_x = (logp > (jnp.max(logp) - 0.1)).astype(jnp.int32)
    return logp, bin_x


def reference_logp_folded(x, w_fold_bf16, b_fold):
    """Reference with the same numerics as the kernel (folded W, bf16 MXU)."""
    logits = jnp.dot(x.astype(jnp.bfloat16), w_fold_bf16,
                     preferred_element_type=jnp.float32) + b_fold
    return jax.nn.log_softmax(logits, axis=1)


if __name__ == "__main__":
    input_size, hidden_size, output_size = 16, 32, 8
    batch = 2

    key = jax.random.PRNGKey(0)
    kx, kb, kp = jax.random.split(key, 3)
    x = jax.random.normal(kx, (batch, input_size), jnp.float32)
    raw_params = init_params(kp, input_size, hidden_size, output_size)
    w_fold, b_fold = prepare_params(*raw_params)

    logp, bin_x = hd_encoder_forward(x, w_fold, b_fold)
    jax.block_until_ready((logp, bin_x))

    assert logp.shape == (batch, output_size) and logp.dtype == jnp.float32
    assert bin_x.shape == (batch, output_size) and bin_x.dtype == jnp.int32

    # Tight check against a reference with identical numerics (folded + bf16).
    ref_bf = reference_logp_folded(x, w_fold, b_fold)
    assert jnp.allclose(logp, ref_bf, atol=1e-4, rtol=1e-4)

    # Sanity check against the full-f32 module semantics (looser tolerance
    # covers bf16 MXU rounding of the single folded matmul).
    ref_logp, _ = reference_forward(x, *raw_params)
    assert jnp.allclose(logp, ref_logp, atol=5e-2, rtol=0)

    # binarize self-consistency (global max - 0.1 threshold).
    assert jnp.array_equal(
        bin_x, (logp > (jnp.max(logp) - 0.1)).astype(jnp.int32))

    # Exercise the multi-tile path: batch grid + ragged last tile.
    x_big = jax.random.normal(kb, (200, input_size), jnp.float32)
    logp_b, bin_b = hd_encoder_forward(x_big, w_fold, b_fold, tile_batch=64)
    jax.block_until_ready((logp_b, bin_b))
    ref_bf_b = reference_logp_folded(x_big, w_fold, b_fold)
    assert jnp.allclose(logp_b, ref_bf_b, atol=1e-4, rtol=1e-4)
    ref_logp_b, _ = reference_forward(x_big, *raw_params)
    assert jnp.allclose(logp_b, ref_logp_b, atol=5e-2, rtol=0)
    assert jnp.array_equal(
        bin_b, (logp_b > (jnp.max(logp_b) - 0.1)).astype(jnp.int32))

    print("KERNEL_OK")
</pallas_src>

<mosaic_0001>
module attributes {stable_mosaic.version = 11 : i64} {
  func.func @_fwd_kernel(%arg0: i32, %arg1: memref<8x16xf32, #tpu.memory_space<vmem>>, %arg2: memref<16x8xbf16, #tpu.memory_space<vmem>>, %arg3: memref<1x8xf32, #tpu.memory_space<vmem>>, %arg4: memref<8x8xf32, #tpu.memory_space<vmem>>) attributes {dimension_semantics = [#tpu.dimension_semantics<parallel>], iteration_bounds = array<i64: 1>, scalar_prefetch = 0 : i64, scratch_operands = 0 : i64, tpu.core_type = #tpu.core_type<tc>, window_params = [{transform_indices = @transform_0, window_bounds = array<i64: 8, 16>}, {pipeline_mode = #tpu.pipeline_mode<synchronous>, transform_indices = @transform_1, window_bounds = array<i64: 16, 8>}, {pipeline_mode = #tpu.pipeline_mode<synchronous>, transform_indices = @transform_2, window_bounds = array<i64: 1, 8>}, {transform_indices = @transform_3, window_bounds = array<i64: 8, 8>}]} {
    %c0 = arith.constant 0 : index
    %c0_0 = arith.constant 0 : index
    %0 = vector.load %arg1[%c0, %c0_0] : memref<8x16xf32, #tpu.memory_space<vmem>>, vector<8x16xf32>
    %1 = arith.truncf %0 : vector<8x16xf32> to vector<8x16xbf16>
    %c0_1 = arith.constant 0 : index
    %c0_2 = arith.constant 0 : index
    %2 = vector.load %arg2[%c0_1, %c0_2] : memref<16x8xbf16, #tpu.memory_space<vmem>>, vector<16x8xbf16>
    %cst = arith.constant dense<0.000000e+00> : vector<8x8xf32>
    %3 = tpu.matmul %1, %2, %cst {dimension_numbers = #tpu.dot_dimension_numbers<[1], [0], [0], [1], [0, 0, 1, 1], [], []>} : vector<8x16xbf16>, vector<16x8xbf16>, vector<8x8xf32> -> vector<8x8xf32>
    %c0_3 = arith.constant 0 : index
    %c0_4 = arith.constant 0 : index
    %4 = vector.load %arg3[%c0_3, %c0_4] : memref<1x8xf32, #tpu.memory_space<vmem>>, vector<1x8xf32>
    %5 = vector.broadcast %4 : vector<1x8xf32> to vector<8x8xf32>
    %6 = arith.addf %3, %5 : vector<8x8xf32>
    %cst_5 = arith.constant dense<0xFF800000> : vector<8xf32>
    %7 = vector.multi_reduction <maximumf>, %6, %cst_5 [1] : vector<8x8xf32> to vector<8xf32>
    %8 = vector.shape_cast %7 : vector<8xf32> to vector<8x1xf32>
    %9 = vector.broadcast %8 : vector<8x1xf32> to vector<8x8xf32>
    %10 = arith.subf %6, %9 : vector<8x8xf32>
    %11 = math.exp %10 : vector<8x8xf32>
    %cst_6 = arith.constant dense<0.000000e+00> : vector<8xf32>
    %12 = vector.multi_reduction <add>, %11, %cst_6 [1] : vector<8x8xf32> to vector<8xf32>
    %13 = vector.shape_cast %12 : vector<8xf32> to vector<8x1xf32>
    %14 = math.log %13 : vector<8x1xf32>
    %15 = vector.broadcast %14 : vector<8x1xf32> to vector<8x8xf32>
    %16 = arith.subf %10, %15 : vector<8x8xf32>
    %c0_7 = arith.constant 0 : index
    %c0_8 = arith.constant 0 : index
    %17 = vector.load %arg4[%c0_7, %c0_8] : memref<8x8xf32, #tpu.memory_space<vmem>>, vector<8x8xf32>
    tpu.vector_store %arg4[%c0_7, %c0_8], %16 {strides = array<i32>} : memref<8x8xf32, #tpu.memory_space<vmem>>, vector<8x8xf32>,
    return
  }
  func.func @transform_0(%arg0: i32) -> (i32, i32) {
    %c0_i32 = arith.constant 0 : i32
    %c0_i32_0 = arith.constant 0 : i32
    return %arg0, %c0_i32 : i32, i32
  }
  func.func @transform_1(%arg0: i32) -> (i32, i32) {
    %c0_i32 = arith.constant 0 : i32
    %c0_i32_0 = arith.constant 0 : i32
    %c0_i32_1 = arith.constant 0 : i32
    return %c0_i32, %c0_i32_0 : i32, i32
  }
  func.func @transform_2(%arg0: i32) -> (i32, i32) {
    %c0_i32 = arith.constant 0 : i32
    %c0_i32_0 = arith.constant 0 : i32
    %c0_i32_1 = arith.constant 0 : i32
    return %c0_i32, %c0_i32_0 : i32, i32
  }
  func.func @transform_3(%arg0: i32) -> (i32, i32) {
    %c0_i32 = arith.constant 0 : i32
    %c0_i32_0 = arith.constant 0 : i32
    return %arg0, %c0_i32 : i32, i32
  }
}

</mosaic_0001>

<llo_original>
// kernel: hd_encoder_forward.1
$region0: #{hd_encoder_forward.1}
  #allocation0 [shape = 'u32[]', space=smem, size = 0x4, offset = 0x4, fixed_abs, tag = 'smem constant byte address 0x4 - core index']
  #allocation1 [shape = 'u32[72,128]{1,0:T(1,128)}', space=vmem, size = 0x9000, scoped, tag = 'internal scratch']
  %s0 = inlined_call_operand.vmem [shape: f32[2,16], index: 0, kind: input, shape index: {}]
  %s1 = inlined_call_operand.vmem [shape: bf16[16,8], index: 1, kind: input, shape index: {}]
  %s2 = inlined_call_operand.vmem [shape: f32[1,8], index: 2, kind: input, shape index: {}]
  %s3 = inlined_call_operand.vmem [shape: f32[2,8], index: 3, kind: output, shape index: {}]
  %s4 = sld [smem:[#allocation0]]
  $region52: #{hd_encoder_forward.1} parent=0
    _
  %s6 = ssub.s32 1, %s4
  %s7 = scalar_select 0, %s6, %s4
  $region1: #{hd_encoder_forward.1} parent=0
    #allocation2 [shape = 'u8[4096]{0}', space=vmem, size = 0x1000, scoped, tag = 'output window, operand 0, single buffered']
    // Predicated region
    $region2: #{hd_encoder_forward.1} parent=1 // pred_check
      _
    $region3: #{hd_encoder_forward.1} parent=1 // pred_check_branch
      %9 = sbr.rel (0) target = $region5
    $region4: #{hd_encoder_forward.1} parent=1 // pred_region
      _
    $region5: #{hd_encoder_forward.1} parent=1 // pred_fallthru
      _
    // Predicated region
    $region6: #{hd_encoder_forward.1} parent=1 // pred_check
      _
    $region7: #{hd_encoder_forward.1} parent=1 // pred_check_branch
      %11 = sbr.rel (0) target = $region9
    $region8: #{hd_encoder_forward.1} parent=1 // pred_region
      _
    $region9: #{hd_encoder_forward.1} parent=1 // pred_fallthru
      _
    // Predicated region
    $region10: #{hd_encoder_forward.1} parent=1 // pred_check
      _
    $region11: #{hd_encoder_forward.1} parent=1 // pred_check_branch
      %13 = sbr.rel (0) target = $region13
    $region12: #{hd_encoder_forward.1} parent=1 // pred_region
      _
    $region13: #{hd_encoder_forward.1} parent=1 // pred_fallthru
      _
    %v15 = vld [vmem:[%s0] sm:$0xff]
    %v16 = vpack.c.bf16 %v15, %v15
    %v17 = vld [vmem:[%s1] sm:$0xf]
    %v18 = vld [vmem:[%s1 + $0x4] sm:$0xf]
    %v19 = vld [vmem:[%s2] sm:$0x1]
    %v21 = vperm.slane %v19, 0
    %v25 = vunpack.c.l.b16 %v17
    %v26 = vunpack.c.l.b16 %v18
    %v27 = vpack.c.b16 %v26, %v25
    %vm29 = vcmask 130048
    %v31 = vsel %vm29, %v16, 0
    %33 = vmatpush.bf16.msra.mxu0 0
    %34 = vmatpush.bf16.msra.mxu0 0
    %35 = vmatpush.bf16.msra.mxu0 0
    %36 = vmatpush.bf16.msra.mxu0 0
    %37 = vmatpush.bf16.msra.mxu0 0
    %38 = vmatpush.bf16.msra.mxu0 0
    %39 = vmatpush.bf16.msra.mxu0 0
    %40 = vmatpush.bf16.msra.mxu0 %v27
    %41 = vmatmul.bf16.gmra.mxu0 %v31
    %v42 = vpop.f32.mrf.mxu0
    %v43 = vadd.f32 %v21, %v42
    %v44 = vpop.f32.mrf.mxu0
    %45 = vdwg.mxu0
    %vm46 = vcmask 64512
    %v47 = vsel %vm46, %v43, -inf
    %48 = vmax.xlane.f32.xlu0 %v47
    %v49 = vpop.xlane.xlu0 %48
    %v50 = vsub.f32 %v43, %v49
    %v51 = vmul.f32 %v50, 1.442695
    %v52 = vpow.pop %v51
    %v53 = vsel %vm46, %v52, 0.0
    %54 = vadd.xlane.f32.xlu0 %v53
    %v55 = vpop.xlane.xlu0 %54
    %v56 = vlog2.pop %v55
    %v57 = vmul.f32 %v56, 0.6931472
    %v58 = vsub.f32 %v50, %v57
    %59 = vst.msk [vmem:[#allocation2] sm:$0xff] %vm46, %v58
    // Predicated region
    $region14: #{hd_encoder_forward.1} parent=1 // pred_check
      _
    $region15: #{hd_encoder_forward.1} parent=1 // pred_check_branch
      %61 = sbr.rel (0) target = $region17
    $region16: #{hd_encoder_forward.1} parent=1 // pred_region
      // Predicated region
      $region18: #{hd_encoder_forward.1} parent=16 // pred_check
        _
      $region19: #{hd_encoder_forward.1} parent=16 // pred_check_branch
        %63 = sbr.rel (0) target = $region21
      $region20: #{hd_encoder_forward.1} parent=16 // pred_region
        // Predicated region
        $region22: #{hd_encoder_forward.1} parent=20 // pred_check
          _
        $region23: #{hd_encoder_forward.1} parent=20 // pred_check_branch
          %65 = sbr.rel target = $region25
        $region24: #{hd_encoder_forward.1} parent=20 // pred_region
          // Predicated region
          $region37: #{hd_encoder_forward.1} parent=24 // pred_check
            _
          $region38: #{hd_encoder_forward.1} parent=24 // pred_check_branch
            %81 = sbr.rel (0) target = $region40
          $region39: #{hd_encoder_forward.1} parent=24 // pred_region
            %s83 = ssub.s32 4, 1
            loop: start=0, step=1, limit=1
            $region41: #{hd_encoder_forward.1} parent=39 // loop_pre_header
              _
            $region42: #{hd_encoder_forward.1} parent=39 // loop_header
              %s85 = sphi 0, %s89
              %p86 = scmp.ge.s32.totalorder %s85, 1
              %s90 = sphi [#allocation2], [#allocation2]
              %s91 = sphi %s3, %s3
            $region43: #{hd_encoder_forward.1} parent=39 // loop_header_branch
              %88 = sbr.rel (%p86) target = $region47
            $region44: #{hd_encoder_forward.1} parent=39 // loop_body
              %v92 = vld [vmem:[%s90] sm:%s83]
              %93 = vst [vmem:[%s91] sm:%s83] %v92
            $region45: #{hd_encoder_forward.1} parent=39 // loop_footer
              %s89 = sadd.s32 1, %s85
            $region46: #{hd_encoder_forward.1} parent=39 // loop_footer_branch
              %84 = sbr.rel target = $region42
            $region47: #{hd_encoder_forward.1} parent=39 // loop_exit
              _
          $region40: #{hd_encoder_forward.1} parent=24 // pred_fallthru
            _
        $region25: #{hd_encoder_forward.1} parent=20 // pred_fallthru
          _
        // Predicated region
        $region26: #{hd_encoder_forward.1} parent=20 // pred_check
          _
        $region27: #{hd_encoder_forward.1} parent=20 // pred_check_branch
          %67 = sbr.rel (0) target = $region29
        $region28: #{hd_encoder_forward.1} parent=20 // pred_region
          %s69 = ssub.s32 4, 1
          loop: start=0, step=1, limit=1
          $region30: #{hd_encoder_forward.1} parent=28 // loop_pre_header
            _
          $region31: #{hd_encoder_forward.1} parent=28 // loop_header
            %s71 = sphi 0, %s75
            %p72 = scmp.ge.s32.totalorder %s71, 1
            %s76 = sphi [#allocation2], [#allocation2]
            %s77 = sphi %s3, %s3
          $region32: #{hd_encoder_forward.1} parent=28 // loop_header_branch
            %74 = sbr.rel (%p72) target = $region36
          $region33: #{hd_encoder_forward.1} parent=28 // loop_body
            %v78 = vld [vmem:[%s76] sm:%s69]
            %79 = vst [vmem:[%s77] sm:%s69] %v78
          $region34: #{hd_encoder_forward.1} parent=28 // loop_footer
            %s75 = sadd.s32 1, %s71
          $region35: #{hd_encoder_forward.1} parent=28 // loop_footer_branch
            %70 = sbr.rel target = $region31
          $region36: #{hd_encoder_forward.1} parent=28 // loop_exit
            _
        $region29: #{hd_encoder_forward.1} parent=20 // pred_fallthru
          _
      $region21: #{hd_encoder_forward.1} parent=16 // pred_fallthru
        _
      %94 = vnop
    $region17: #{hd_encoder_forward.1} parent=1 // pred_fallthru
      _
    // Predicated region
    $region48: #{hd_encoder_forward.1} parent=1 // pred_check
      _
    $region49: #{hd_encoder_forward.1} parent=1 // pred_check_branch
      %96 = sbr.rel (0) target = $region51
    $region50: #{hd_encoder_forward.1} parent=1 // pred_region
      _
    $region51: #{hd_encoder_forward.1} parent=1 // pred_fallthru
      _

</llo_original>
